<compile_context>
chip_gen: v6e
topology: v6e:2x2x1
jax: 0.10.0
libtpu: 0.0.40
codegen_flags: <defaults>
</compile_context>

<pallas_src>
import jax
import jax.numpy as jnp
from jax.experimental import pallas as pl
from jax.experimental.pallas import tpu as pltpu

H = 128                      # h_size (module default)
NEG = -1.0e9                 # bias for padded logit lanes (softmaxes to ~0)
LSE_LANE, ENT_LANE, VAL_LANE = 125, 126, 127   # stat lanes in the output slab

DECODER_BY_INSTRUCTION = {
    0: "x", 1: "l2", 2: "l1", 3: "bank", 4: "parallel",
    5: "N", 6: "K", 7: "C", 8: "Y", 9: "X", 10: "R",      # else -> "S"
}


def _round_up(x, m):
    return ((x + m - 1) // m) * m


# ----------------------------------------------------------------------------
# Pallas kernel: shared encoder+critic (once per batch tile) + per-head decoder
# ----------------------------------------------------------------------------
def actor_kernel(state_ref, we0_ref, we1_ref, we2_ref, wc0_ref, wc1_ref,
                 benc_ref, wd0_ref, wd1_ref, bd_ref, out_ref, h_scr, v_scr):
    j = pl.program_id(1)                 # head index within this call

    # ---- shared encoder + critic: run once per batch tile (head 0) ----------
    @pl.when(j == 0)
    def _():
        b = benc_ref[...]                                          # (8, MIDP)
        x = state_ref[...]                                         # (TB, SP)
        h = jnp.maximum(
            jnp.dot(x, we0_ref[...], preferred_element_type=jnp.float32)
            + b[0:1, :], 0.0)                                      # (TB, MIDP)
        h = jnp.maximum(
            jnp.dot(h, we1_ref[...], preferred_element_type=jnp.float32)
            + b[1:2, :H], 0.0)                                     # (TB, H)
        h = jnp.maximum(
            jnp.dot(h, we2_ref[...], preferred_element_type=jnp.float32)
            + b[2:3, :H], 0.0)                                     # (TB, H)
        h_scr[...] = h
        # critic (head-independent): value via VPU mul + XLU lane-reduce;
        # bc1 is packed at lane 0 of bias row 4 and added through the sum.
        c = jnp.maximum(
            jnp.dot(h, wc0_ref[...], preferred_element_type=jnp.float32)
            + b[3:4, :H], 0.0)
        v_scr[...] = jnp.sum(c * wc1_ref[...] + b[4:5, :H],
                             axis=-1, keepdims=True)               # (TB, 1)

    # ---- per-head decoder ----------------------------------------------------
    h = h_scr[...]                                                 # (TB, H)
    bd = bd_ref[0]                                                 # (2, H)
    y = jnp.maximum(
        jnp.dot(h, wd0_ref[0], preferred_element_type=jnp.float32)
        + bd[0:1, :], 0.0)
    z = (jnp.dot(y, wd1_ref[0], preferred_element_type=jnp.float32)
         + bd[1:2, :])                                             # (TB, H)
    # lanes >= n_act carry a -1e9 bias -> underflow to 0 under the softmax

    # max-stabilized softmax stats (no p/logp temporaries)
    m = jnp.max(z, axis=-1, keepdims=True)
    zz = z - m
    e = jnp.exp(zz)
    s = jnp.sum(e, axis=-1, keepdims=True)
    log_s = jnp.log(s)
    inv_s = pl.reciprocal(s, approx=True)        # EUP slot, nearly free
    inv_s = inv_s * (2.0 - s * inv_s)            # one Newton step -> ~f32 exact
    ent = log_s - jnp.sum(e * zz, axis=-1, keepdims=True) * inv_s  # (TB, 1)
    lse = m + log_s                                                # (TB, 1)

    # pack stats into otherwise-dead logit lanes: one lane-dense (TB,128) write
    lane = jax.lax.broadcasted_iota(jnp.int32, z.shape, 1)
    out = jnp.where(lane == LSE_LANE, lse,
                    jnp.where(lane == ENT_LANE, ent,
                              jnp.where(lane == VAL_LANE, v_scr[...], z)))
    out_ref[0] = out


# ----------------------------------------------------------------------------
# Wrapper
# ----------------------------------------------------------------------------
def actor_pallas(state_p, packed, head_sel=None):
    """head_sel=None -> evaluate all stacked heads; int -> only that head."""
    B, SP = state_p.shape
    MIDP = packed["we0"].shape[1]
    n_heads_total = packed["wd0"].shape[0]

    if head_sel is None:
        NH = n_heads_total
        hmap = lambda i, j: (j, 0, 0)
    else:
        hs = int(head_sel)
        NH = 1
        hmap = lambda i, j: (hs, 0, 0)   # static head index; only its block DMAs

    TB = B if B <= 256 else 256          # 256-tall LHS fills v6e/v7x MXU rows
    grid = (pl.cdiv(B, TB), NH)

    return pl.pallas_call(
        actor_kernel,
        out_shape=jax.ShapeDtypeStruct((NH, B, H), jnp.float32),
        grid_spec=pltpu.PrefetchScalarGridSpec(
            num_scalar_prefetch=0,
            grid=grid,
            in_specs=[
                pl.BlockSpec((TB, SP), lambda i, j: (i, 0)),      # state (padded to 128)
                pl.BlockSpec((SP, MIDP), lambda i, j: (0, 0)),    # enc L0 (128,256)
                pl.BlockSpec((MIDP, H), lambda i, j: (0, 0)),     # enc L1 (256,128)
                pl.BlockSpec((H, H), lambda i, j: (0, 0)),        # enc L2 (128,128)
                pl.BlockSpec((H, H), lambda i, j: (0, 0)),        # critic L0 (128,128)
                pl.BlockSpec((1, H), lambda i, j: (0, 0)),        # critic L1 row (1,128)
                pl.BlockSpec((8, MIDP), lambda i, j: (0, 0)),     # packed enc/critic biases
                pl.BlockSpec((1, H, H), hmap),                    # decoder L0 stack
                pl.BlockSpec((1, H, H), hmap),                    # decoder L1 stack
                pl.BlockSpec((1, 2, H), hmap),                    # decoder bias stack
            ],
            out_specs=pl.BlockSpec((1, TB, H), lambda i, j: (j, i, 0)),
            scratch_shapes=[pltpu.VMEM((TB, H), jnp.float32),     # shared encoder h
                            pltpu.VMEM((TB, 1), jnp.float32)],    # shared critic value
        ),
        compiler_params=pltpu.CompilerParams(
            # batch axis megacore-parallel; head axis must be "arbitrary"
            # because the encoder scratch is computed at head 0 and reused.
            dimension_semantics=("parallel", "arbitrary")),
    )(state_p, packed["we0"], packed["we1"], packed["we2"],
      packed["wc0"], packed["wc1"], packed["b_enc"],
      packed["wd0"], packed["wd1"], packed["bd"])


def _pad_state(state, sp):
    B, dl = state.shape
    return jnp.zeros((B, sp), state.dtype).at[:, :dl].set(state)


def actor_forward(state, packed, instruction, sample_key):
    """Mirrors Actor.forward(state, instruction) -> (action, log_prob, entropy, value)."""
    name = DECODER_BY_INSTRUCTION.get(int(instruction), "S")
    idx = packed["head_index"][name]
    n_act = packed["n_act"][name]

    state_p = _pad_state(state, packed["we0"].shape[0])
    out = actor_pallas(state_p, packed, head_sel=idx)[0]          # (B, 128)

    logits = out[:, :n_act]
    lse = out[:, LSE_LANE:LSE_LANE + 1]
    entropy = out[:, ENT_LANE]
    value = out[:, VAL_LANE]
    logp = logits - lse                                           # log_softmax

    # Categorical sampling + log_prob gather (stochastic glue, outside kernel)
    action = jax.random.categorical(sample_key, logits, axis=-1)
    log_prob = jnp.take_along_axis(logp, action[:, None], axis=-1)[:, 0]
    return action, log_prob, entropy, value, logits, logp


def actor_forward_all_heads(state, packed):
    """All 12 decoder heads + shared encoder + critic in ONE pallas_call."""
    state_p = _pad_state(state, packed["we0"].shape[0])
    out = actor_pallas(state_p, packed, head_sel=None)            # (NH, B, 128)
    results = {}
    for name in packed["head_order"]:
        k = packed["head_index"][name]
        n_act = packed["n_act"][name]
        o = out[k]
        results[name] = dict(
            logits=o[:, :n_act],
            logp=o[:, :n_act] - o[:, LSE_LANE:LSE_LANE + 1],
            entropy=o[:, ENT_LANE],
            value=o[:, VAL_LANE])
    return results


# ----------------------------------------------------------------------------
# Parameters: xavier_uniform weights, zero biases (matches init_weights),
# stored as [in, out]; packed into the ragged 128-aligned layout.
# ----------------------------------------------------------------------------
def xavier_uniform(key, fan_in, fan_out):
    bound = (6.0 / (fan_in + fan_out)) ** 0.5
    return jax.random.uniform(key, (fan_in, fan_out), jnp.float32, -bound, bound)


def make_linear(key, fan_in, fan_out):
    return xavier_uniform(key, fan_in, fan_out), jnp.zeros((fan_out,), jnp.float32)


def make_raw_params(key, dim_length, hidden_dim, h_size, action_sizes):
    keys = iter(jax.random.split(key, 64))
    mid = dim_length * hidden_dim
    enc = [make_linear(next(keys), dim_length, mid),
           make_linear(next(keys), mid, h_size),
           make_linear(next(keys), h_size, h_size)]
    decoders = {name: [make_linear(next(keys), h_size, h_size),
                       make_linear(next(keys), h_size, n_act)]
                for name, n_act in action_sizes.items()}
    critic = [make_linear(next(keys), h_size, h_size),
              make_linear(next(keys), h_size, 1)]
    return dict(enc=enc, decoders=decoders, critic=critic)


def pack_params(raw, action_sizes, h_size=H):
    assert h_size == H
    (w0, b0), (w1, b1), (w2, b2) = raw["enc"]
    (wc0, bc0), (wc1, bc1) = raw["critic"]
    dl, mid = w0.shape
    SP = max(H, _round_up(dl, 128))           # padded state width   (128)
    MIDP = max(H, _round_up(mid, 128))        # padded encoder mid   (256)

    we0 = jnp.zeros((SP, MIDP), jnp.float32).at[:dl, :mid].set(w0)
    we1 = jnp.zeros((MIDP, H), jnp.float32).at[:mid, :].set(w1)
    we2 = w2.astype(jnp.float32)
    wc0p = wc0.astype(jnp.float32)
    wc1_row = wc1.T.astype(jnp.float32)       # (1, H)

    b_enc = jnp.zeros((8, MIDP), jnp.float32)
    b_enc = b_enc.at[0, :mid].set(b0)
    b_enc = b_enc.at[1, :H].set(b1)
    b_enc = b_enc.at[2, :H].set(b2)
    b_enc = b_enc.at[3, :H].set(bc0)
    b_enc = b_enc.at[4, 0].set(bc1[0])        # critic output bias (added via lane-sum)

    head_order = list(action_sizes.keys())
    nh = len(head_order)
    wd0 = jnp.zeros((nh, H, H), jnp.float32)
    wd1 = jnp.zeros((nh, H, H), jnp.float32)
    bd = jnp.zeros((nh, 2, H), jnp.float32)
    head_index, n_act_map = {}, {}
    for k, name in enumerate(head_order):
        (d0w, d0b), (d1w, d1b) = raw["decoders"][name]
        n_act = action_sizes[name]
        assert n_act <= LSE_LANE, "logit lanes would collide with packed stat lanes"
        wd0 = wd0.at[k].set(d0w)
        wd1 = wd1.at[k, :, :n_act].set(d1w)
        bd = bd.at[k, 0, :].set(d0b)
        bd = bd.at[k, 1, :n_act].set(d1b)
        bd = bd.at[k, 1, n_act:].set(NEG)     # kill padded logit lanes
        head_index[name] = k
        n_act_map[name] = n_act

    return dict(we0=we0, we1=we1, we2=we2, wc0=wc0p, wc1=wc1_row, b_enc=b_enc,
                wd0=wd0, wd1=wd1, bd=bd,
                head_order=head_order, head_index=head_index, n_act=n_act_map)


# ----------------------------------------------------------------------------
# Pure-JAX reference (deterministic part) on the ORIGINAL unpacked params
# ----------------------------------------------------------------------------
def reference_forward(state, raw, dec_name):
    relu = lambda v: jnp.maximum(v, 0.0)
    (w0, b0), (w1, b1), (w2, b2) = raw["enc"]
    h = relu(state @ w0 + b0)
    h = relu(h @ w1 + b1)
    h = relu(h @ w2 + b2)
    (wd0, bd0), (wd1, bd1) = raw["decoders"][dec_name]
    d = relu(h @ wd0 + bd0)
    logits = d @ wd1 + bd1
    logp = jax.nn.log_softmax(logits, axis=-1)
    p = jax.nn.softmax(logits, axis=-1)
    ent = -jnp.sum(p * logp, axis=-1)
    (wc0, bc0), (wc1, bc1) = raw["critic"]
    c = relu(h @ wc0 + bc0)
    val = (c @ wc1 + bc1)[:, 0]
    return logits, logp, ent, val


# ----------------------------------------------------------------------------
# Main
# ----------------------------------------------------------------------------
if __name__ == "__main__":
    slevel, h_size, hidden_dim = 3, 128, 10
    dim_length = 4 + 7 * (slevel - 1) + (slevel - 1)   # = 20
    batch = 8

    action_sizes = {
        "x": 12, "l2": 10, "l1": 10, "bank": 8, "parallel": 7,
        "N": 6, "K": 6, "C": 6, "Y": 6, "X": 6, "R": 6, "S": 6,
    }

    root = jax.random.PRNGKey(0)
    k_param, k_state, k_sample = jax.random.split(root, 3)

    raw = make_raw_params(k_param, dim_length, hidden_dim, h_size, action_sizes)
    packed = pack_params(raw, action_sizes, h_size)
    state = jax.random.normal(k_state, (batch, dim_length), dtype=jnp.float32)

    # --- single-instruction path (mirrors Actor.forward(state, instruction)) ---
    instruction = 0   # -> x_decoder branch
    action, log_prob, entropy, value, logits, logp = actor_forward(
        state, packed, instruction, k_sample)
    jax.block_until_ready((action, log_prob, entropy, value))

    ref_logits, ref_logp, ref_ent, ref_val = reference_forward(state, raw, "x")
    assert jnp.allclose(logits, ref_logits, atol=1e-4, rtol=1e-4)
    assert jnp.allclose(logp, ref_logp, atol=1e-4, rtol=1e-4)
    assert jnp.allclose(value, ref_val, atol=1e-4, rtol=1e-4)
    assert jnp.allclose(entropy, ref_ent, atol=5e-4, rtol=5e-4)
    assert action.shape == (batch,) and log_prob.shape == (batch,)
    assert entropy.shape == (batch,) and value.shape == (batch,)
    assert int(jnp.max(action)) < action_sizes["x"]

    # --- all-heads path: one pallas_call amortizes encoder DMA over 12 heads ---
    all_heads = actor_forward_all_heads(state, packed)
    jax.block_until_ready(all_heads)
    for name in ("x", "K", "S"):
        r_logits, r_logp, r_ent, r_val = reference_forward(state, raw, name)
        assert jnp.allclose(all_heads[name]["logits"], r_logits, atol=1e-4, rtol=1e-4)
        assert jnp.allclose(all_heads[name]["logp"], r_logp, atol=1e-4, rtol=1e-4)
        assert jnp.allclose(all_heads[name]["value"], r_val, atol=1e-4, rtol=1e-4)
        assert jnp.allclose(all_heads[name]["entropy"], r_ent, atol=5e-4, rtol=5e-4)

    print("KERNEL_OK")
</pallas_src>

<mosaic_0001>
module attributes {stable_mosaic.version = 11 : i64} {
  func.func @actor_kernel(%arg0: i32, %arg1: i32, %arg2: memref<8x128xf32, #tpu.memory_space<vmem>>, %arg3: memref<128x256xf32, #tpu.memory_space<vmem>>, %arg4: memref<256x128xf32, #tpu.memory_space<vmem>>, %arg5: memref<128x128xf32, #tpu.memory_space<vmem>>, %arg6: memref<128x128xf32, #tpu.memory_space<vmem>>, %arg7: memref<1x128xf32, #tpu.memory_space<vmem>>, %arg8: memref<8x256xf32, #tpu.memory_space<vmem>>, %arg9: memref<1x128x128xf32, #tpu.memory_space<vmem>>, %arg10: memref<1x128x128xf32, #tpu.memory_space<vmem>>, %arg11: memref<1x2x128xf32, #tpu.memory_space<vmem>>, %arg12: memref<1x8x128xf32, #tpu.memory_space<vmem>>, %arg13: memref<8x128xf32, #tpu.memory_space<vmem>>, %arg14: memref<8x1xf32, #tpu.memory_space<vmem>>) attributes {dimension_semantics = [#tpu.dimension_semantics<parallel>, #tpu.dimension_semantics<arbitrary>], iteration_bounds = array<i64: 1, 1>, scalar_prefetch = 0 : i64, scratch_operands = 2 : i64, tpu.core_type = #tpu.core_type<tc>, window_params = [{transform_indices = @transform_0, window_bounds = array<i64: 8, 128>}, {pipeline_mode = #tpu.pipeline_mode<synchronous>, transform_indices = @transform_1, window_bounds = array<i64: 128, 256>}, {pipeline_mode = #tpu.pipeline_mode<synchronous>, transform_indices = @transform_2, window_bounds = array<i64: 256, 128>}, {pipeline_mode = #tpu.pipeline_mode<synchronous>, transform_indices = @transform_3, window_bounds = array<i64: 128, 128>}, {pipeline_mode = #tpu.pipeline_mode<synchronous>, transform_indices = @transform_4, window_bounds = array<i64: 128, 128>}, {pipeline_mode = #tpu.pipeline_mode<synchronous>, transform_indices = @transform_5, window_bounds = array<i64: 1, 128>}, {pipeline_mode = #tpu.pipeline_mode<synchronous>, transform_indices = @transform_6, window_bounds = array<i64: 8, 256>}, {transform_indices = @transform_7, window_bounds = array<i64: 1, 128, 128>}, {transform_indices = @transform_8, window_bounds = array<i64: 1, 128, 128>}, {transform_indices = @transform_9, window_bounds = array<i64: 1, 2, 128>}, {transform_indices = @transform_10, window_bounds = array<i64: 1, 8, 128>}]} {
    %c0_i32 = arith.constant 0 : i32
    %0 = arith.cmpi eq, %arg1, %c0_i32 : i32
    %1 = arith.extui %0 : i1 to i32
    %c0_i32_0 = arith.constant 0 : i32
    %2 = arith.cmpi ne, %1, %c0_i32_0 : i32
    scf.if %2 {
      %c0_22 = arith.constant 0 : index
      %c0_23 = arith.constant 0 : index
      %59 = vector.load %arg8[%c0_22, %c0_23] : memref<8x256xf32, #tpu.memory_space<vmem>>, vector<8x256xf32>
      %c0_24 = arith.constant 0 : index
      %c0_25 = arith.constant 0 : index
      %60 = vector.load %arg2[%c0_24, %c0_25] : memref<8x128xf32, #tpu.memory_space<vmem>>, vector<8x128xf32>
      %c0_26 = arith.constant 0 : index
      %c0_27 = arith.constant 0 : index
      %61 = vector.load %arg3[%c0_26, %c0_27] : memref<128x256xf32, #tpu.memory_space<vmem>>, vector<128x256xf32>
      %cst_28 = arith.constant dense<0.000000e+00> : vector<8x256xf32>
      %62 = tpu.matmul %60, %61, %cst_28 {dimension_numbers = #tpu.dot_dimension_numbers<[1], [0], [0], [1], [0, 0, 1, 1], [], []>} : vector<8x128xf32>, vector<128x256xf32>, vector<8x256xf32> -> vector<8x256xf32>
      %63 = vector.extract_strided_slice %59 {offsets = [0, 0], sizes = [1, 256], strides = [1, 1]} : vector<8x256xf32> to vector<1x256xf32>
      %64 = vector.broadcast %63 : vector<1x256xf32> to vector<8x256xf32>
      %65 = arith.addf %62, %64 : vector<8x256xf32>
      %cst_29 = arith.constant 0.000000e+00 : f32
      %66 = vector.broadcast %cst_29 : f32 to vector<8x256xf32>
      %67 = arith.maximumf %65, %66 : vector<8x256xf32>
      %c0_30 = arith.constant 0 : index
      %c0_31 = arith.constant 0 : index
      %68 = vector.load %arg4[%c0_30, %c0_31] : memref<256x128xf32, #tpu.memory_space<vmem>>, vector<256x128xf32>
      %cst_32 = arith.constant dense<0.000000e+00> : vector<8x128xf32>
      %69 = tpu.matmul %67, %68, %cst_32 {dimension_numbers = #tpu.dot_dimension_numbers<[1], [0], [0], [1], [0, 0, 1, 1], [], []>} : vector<8x256xf32>, vector<256x128xf32>, vector<8x128xf32> -> vector<8x128xf32>
      %70 = vector.extract_strided_slice %59 {offsets = [1, 0], sizes = [1, 128], strides = [1, 1]} : vector<8x256xf32> to vector<1x128xf32>
      %71 = vector.broadcast %70 : vector<1x128xf32> to vector<8x128xf32>
      %72 = arith.addf %69, %71 : vector<8x128xf32>
      %cst_33 = arith.constant 0.000000e+00 : f32
      %73 = vector.broadcast %cst_33 : f32 to vector<8x128xf32>
      %74 = arith.maximumf %72, %73 : vector<8x128xf32>
      %c0_34 = arith.constant 0 : index
      %c0_35 = arith.constant 0 : index
      %75 = vector.load %arg5[%c0_34, %c0_35] : memref<128x128xf32, #tpu.memory_space<vmem>>, vector<128x128xf32>
      %cst_36 = arith.constant dense<0.000000e+00> : vector<8x128xf32>
      %76 = tpu.matmul %74, %75, %cst_36 {dimension_numbers = #tpu.dot_dimension_numbers<[1], [0], [0], [1], [0, 0, 1, 1], [], []>} : vector<8x128xf32>, vector<128x128xf32>, vector<8x128xf32> -> vector<8x128xf32>
      %77 = vector.extract_strided_slice %59 {offsets = [2, 0], sizes = [1, 128], strides = [1, 1]} : vector<8x256xf32> to vector<1x128xf32>
      %78 = vector.broadcast %77 : vector<1x128xf32> to vector<8x128xf32>
      %79 = arith.addf %76, %78 : vector<8x128xf32>
      %cst_37 = arith.constant 0.000000e+00 : f32
      %80 = vector.broadcast %cst_37 : f32 to vector<8x128xf32>
      %81 = arith.maximumf %79, %80 : vector<8x128xf32>
      %c0_38 = arith.constant 0 : index
      %c0_39 = arith.constant 0 : index
      %82 = vector.load %arg13[%c0_38, %c0_39] : memref<8x128xf32, #tpu.memory_space<vmem>>, vector<8x128xf32>
      tpu.vector_store %arg13[%c0_38, %c0_39], %81 {strides = array<i32>} : memref<8x128xf32, #tpu.memory_space<vmem>>, vector<8x128xf32>,
      %c0_40 = arith.constant 0 : index
      %c0_41 = arith.constant 0 : index
      %83 = vector.load %arg6[%c0_40, %c0_41] : memref<128x128xf32, #tpu.memory_space<vmem>>, vector<128x128xf32>
      %cst_42 = arith.constant dense<0.000000e+00> : vector<8x128xf32>
      %84 = tpu.matmul %81, %83, %cst_42 {dimension_numbers = #tpu.dot_dimension_numbers<[1], [0], [0], [1], [0, 0, 1, 1], [], []>} : vector<8x128xf32>, vector<128x128xf32>, vector<8x128xf32> -> vector<8x128xf32>
      %85 = vector.extract_strided_slice %59 {offsets = [3, 0], sizes = [1, 128], strides = [1, 1]} : vector<8x256xf32> to vector<1x128xf32>
      %86 = vector.broadcast %85 : vector<1x128xf32> to vector<8x128xf32>
      %87 = arith.addf %84, %86 : vector<8x128xf32>
      %cst_43 = arith.constant 0.000000e+00 : f32
      %88 = vector.broadcast %cst_43 : f32 to vector<8x128xf32>
      %89 = arith.maximumf %87, %88 : vector<8x128xf32>
      %c0_44 = arith.constant 0 : index
      %c0_45 = arith.constant 0 : index
      %90 = vector.load %arg7[%c0_44, %c0_45] : memref<1x128xf32, #tpu.memory_space<vmem>>, vector<1x128xf32>
      %91 = vector.broadcast %90 : vector<1x128xf32> to vector<8x128xf32>
      %92 = arith.mulf %89, %91 : vector<8x128xf32>
      %93 = vector.extract_strided_slice %59 {offsets = [4, 0], sizes = [1, 128], strides = [1, 1]} : vector<8x256xf32> to vector<1x128xf32>
      %94 = vector.broadcast %93 : vector<1x128xf32> to vector<8x128xf32>
      %95 = arith.addf %92, %94 : vector<8x128xf32>
      %cst_46 = arith.constant dense<0.000000e+00> : vector<8xf32>
      %96 = vector.multi_reduction <add>, %95, %cst_46 [1] : vector<8x128xf32> to vector<8xf32>
      %97 = vector.shape_cast %96 : vector<8xf32> to vector<8x1xf32>
      %c0_47 = arith.constant 0 : index
      %c0_48 = arith.constant 0 : index
      %98 = vector.load %arg14[%c0_47, %c0_48] : memref<8x1xf32, #tpu.memory_space<vmem>>, vector<8x1xf32>
      tpu.vector_store %arg14[%c0_47, %c0_48], %97 {strides = array<i32>} : memref<8x1xf32, #tpu.memory_space<vmem>>, vector<8x1xf32>,
    } else {
    }
    %c0 = arith.constant 0 : index
    %c0_1 = arith.constant 0 : index
    %3 = vector.load %arg13[%c0, %c0_1] : memref<8x128xf32, #tpu.memory_space<vmem>>, vector<8x128xf32>
    %c0_2 = arith.constant 0 : index
    %c0_3 = arith.constant 0 : index
    %c0_4 = arith.constant 0 : index
    %4 = vector.load %arg11[%c0_2, %c0_3, %c0_4] : memref<1x2x128xf32, #tpu.memory_space<vmem>>, vector<1x2x128xf32>
    %5 = vector.shape_cast %4 : vector<1x2x128xf32> to vector<2x128xf32>
    %c0_5 = arith.constant 0 : index
    %c0_6 = arith.constant 0 : index
    %c0_7 = arith.constant 0 : index
    %6 = vector.load %arg9[%c0_5, %c0_6, %c0_7] : memref<1x128x128xf32, #tpu.memory_space<vmem>>, vector<1x128x128xf32>
    %7 = vector.shape_cast %6 : vector<1x128x128xf32> to vector<128x128xf32>
    %cst = arith.constant dense<0.000000e+00> : vector<8x128xf32>
    %8 = tpu.matmul %3, %7, %cst {dimension_numbers = #tpu.dot_dimension_numbers<[1], [0], [0], [1], [0, 0, 1, 1], [], []>} : vector<8x128xf32>, vector<128x128xf32>, vector<8x128xf32> -> vector<8x128xf32>
    %9 = vector.extract_strided_slice %5 {offsets = [0, 0], sizes = [1, 128], strides = [1, 1]} : vector<2x128xf32> to vector<1x128xf32>
    %10 = vector.broadcast %9 : vector<1x128xf32> to vector<8x128xf32>
    %11 = arith.addf %8, %10 : vector<8x128xf32>
    %cst_8 = arith.constant 0.000000e+00 : f32
    %12 = vector.broadcast %cst_8 : f32 to vector<8x128xf32>
    %13 = arith.maximumf %11, %12 : vector<8x128xf32>
    %c0_9 = arith.constant 0 : index
    %c0_10 = arith.constant 0 : index
    %c0_11 = arith.constant 0 : index
    %14 = vector.load %arg10[%c0_9, %c0_10, %c0_11] : memref<1x128x128xf32, #tpu.memory_space<vmem>>, vector<1x128x128xf32>
    %15 = vector.shape_cast %14 : vector<1x128x128xf32> to vector<128x128xf32>
    %cst_12 = arith.constant dense<0.000000e+00> : vector<8x128xf32>
    %16 = tpu.matmul %13, %15, %cst_12 {dimension_numbers = #tpu.dot_dimension_numbers<[1], [0], [0], [1], [0, 0, 1, 1], [], []>} : vector<8x128xf32>, vector<128x128xf32>, vector<8x128xf32> -> vector<8x128xf32>
    %17 = vector.extract_strided_slice %5 {offsets = [1, 0], sizes = [1, 128], strides = [1, 1]} : vector<2x128xf32> to vector<1x128xf32>
    %18 = vector.broadcast %17 : vector<1x128xf32> to vector<8x128xf32>
    %19 = arith.addf %16, %18 : vector<8x128xf32>
    %cst_13 = arith.constant dense<0xFF800000> : vector<8xf32>
    %20 = vector.multi_reduction <maximumf>, %19, %cst_13 [1] : vector<8x128xf32> to vector<8xf32>
    %21 = vector.shape_cast %20 : vector<8xf32> to vector<8x1xf32>
    %22 = vector.broadcast %21 : vector<8x1xf32> to vector<8x128xf32>
    %23 = arith.subf %19, %22 : vector<8x128xf32>
    %24 = math.exp %23 : vector<8x128xf32>
    %cst_14 = arith.constant dense<0.000000e+00> : vector<8xf32>
    %25 = vector.multi_reduction <add>, %24, %cst_14 [1] : vector<8x128xf32> to vector<8xf32>
    %26 = vector.shape_cast %25 : vector<8xf32> to vector<8x1xf32>
    %27 = math.log %26 : vector<8x1xf32>
    %28 = tpu.reciprocal %26 {approx = true} : vector<8x1xf32> -> vector<8x1xf32>
    %29 = arith.mulf %26, %28 : vector<8x1xf32>
    %cst_15 = arith.constant 2.000000e+00 : f32
    %30 = vector.broadcast %cst_15 : f32 to vector<8x1xf32>
    %31 = arith.subf %30, %29 : vector<8x1xf32>
    %32 = arith.mulf %28, %31 : vector<8x1xf32>
    %33 = arith.mulf %24, %23 : vector<8x128xf32>
    %cst_16 = arith.constant dense<0.000000e+00> : vector<8xf32>
    %34 = vector.multi_reduction <add>, %33, %cst_16 [1] : vector<8x128xf32> to vector<8xf32>
    %35 = vector.shape_cast %34 : vector<8xf32> to vector<8x1xf32>
    %36 = arith.mulf %35, %32 : vector<8x1xf32>
    %37 = arith.subf %27, %36 : vector<8x1xf32>
    %38 = arith.addf %21, %27 : vector<8x1xf32>
    %39 = tpu.iota {dimensions = array<i32: 1>} : vector<8x128xi32>
    %c125_i32 = arith.constant 125 : i32
    %40 = vector.broadcast %c125_i32 : i32 to vector<8x128xi32>
    %41 = arith.cmpi eq, %39, %40 : vector<8x128xi32>
    %c126_i32 = arith.constant 126 : i32
    %42 = vector.broadcast %c126_i32 : i32 to vector<8x128xi32>
    %43 = arith.cmpi eq, %39, %42 : vector<8x128xi32>
    %c127_i32 = arith.constant 127 : i32
    %44 = vector.broadcast %c127_i32 : i32 to vector<8x128xi32>
    %45 = arith.cmpi eq, %39, %44 : vector<8x128xi32>
    %c0_17 = arith.constant 0 : index
    %c0_18 = arith.constant 0 : index
    %46 = vector.load %arg14[%c0_17, %c0_18] : memref<8x1xf32, #tpu.memory_space<vmem>>, vector<8x1xf32>
    %47 = vector.shape_cast %46 : vector<8x1xf32> to vector<8x1xf32>
    %48 = vector.broadcast %47 : vector<8x1xf32> to vector<8x128xf32>
    %49 = arith.select %45, %48, %19 : vector<8x128xi1>, vector<8x128xf32>
    %50 = vector.shape_cast %37 : vector<8x1xf32> to vector<8x1xf32>
    %51 = vector.broadcast %50 : vector<8x1xf32> to vector<8x128xf32>
    %52 = arith.select %43, %51, %49 : vector<8x128xi1>, vector<8x128xf32>
    %53 = vector.shape_cast %38 : vector<8x1xf32> to vector<8x1xf32>
    %54 = vector.broadcast %53 : vector<8x1xf32> to vector<8x128xf32>
    %55 = arith.select %41, %54, %52 : vector<8x128xi1>, vector<8x128xf32>
    %c0_19 = arith.constant 0 : index
    %c0_20 = arith.constant 0 : index
    %c0_21 = arith.constant 0 : index
    %56 = vector.load %arg12[%c0_19, %c0_20, %c0_21] : memref<1x8x128xf32, #tpu.memory_space<vmem>>, vector<1x8x128xf32>
    %57 = vector.shape_cast %56 : vector<1x8x128xf32> to vector<8x128xf32>
    %58 = vector.shape_cast %55 : vector<8x128xf32> to vector<1x8x128xf32>
    tpu.vector_store %arg12[%c0_19, %c0_20, %c0_21], %58 {strides = array<i32>} : memref<1x8x128xf32, #tpu.memory_space<vmem>>, vector<1x8x128xf32>,
    return
  }
  func.func @transform_0(%arg0: i32, %arg1: i32) -> (i32, i32) {
    %c0_i32 = arith.constant 0 : i32
    %c0_i32_0 = arith.constant 0 : i32
    return %arg0, %c0_i32 : i32, i32
  }
  func.func @transform_1(%arg0: i32, %arg1: i32) -> (i32, i32) {
    %c0_i32 = arith.constant 0 : i32
    %c0_i32_0 = arith.constant 0 : i32
    %c0_i32_1 = arith.constant 0 : i32
    return %c0_i32, %c0_i32_0 : i32, i32
  }
  func.func @transform_2(%arg0: i32, %arg1: i32) -> (i32, i32) {
    %c0_i32 = arith.constant 0 : i32
    %c0_i32_0 = arith.constant 0 : i32
    %c0_i32_1 = arith.constant 0 : i32
    return %c0_i32, %c0_i32_0 : i32, i32
  }
  func.func @transform_3(%arg0: i32, %arg1: i32) -> (i32, i32) {
    %c0_i32 = arith.constant 0 : i32
    %c0_i32_0 = arith.constant 0 : i32
    %c0_i32_1 = arith.constant 0 : i32
    return %c0_i32, %c0_i32_0 : i32, i32
  }
  func.func @transform_4(%arg0: i32, %arg1: i32) -> (i32, i32) {
    %c0_i32 = arith.constant 0 : i32
    %c0_i32_0 = arith.constant 0 : i32
    %c0_i32_1 = arith.constant 0 : i32
    return %c0_i32, %c0_i32_0 : i32, i32
  }
  func.func @transform_5(%arg0: i32, %arg1: i32) -> (i32, i32) {
    %c0_i32 = arith.constant 0 : i32
    %c0_i32_0 = arith.constant 0 : i32
    %c0_i32_1 = arith.constant 0 : i32
    return %c0_i32, %c0_i32_0 : i32, i32
  }
  func.func @transform_6(%arg0: i32, %arg1: i32) -> (i32, i32) {
    %c0_i32 = arith.constant 0 : i32
    %c0_i32_0 = arith.constant 0 : i32
    %c0_i32_1 = arith.constant 0 : i32
    return %c0_i32, %c0_i32_0 : i32, i32
  }
  func.func @transform_7(%arg0: i32, %arg1: i32) -> (i32, i32, i32) {
    %c0_i32 = arith.constant 0 : i32
    %c0_i32_0 = arith.constant 0 : i32
    %c0_i32_1 = arith.constant 0 : i32
    %c0_i32_2 = arith.constant 0 : i32
    return %c0_i32, %c0_i32_0, %c0_i32_1 : i32, i32, i32
  }
  func.func @transform_8(%arg0: i32, %arg1: i32) -> (i32, i32, i32) {
    %c0_i32 = arith.constant 0 : i32
    %c0_i32_0 = arith.constant 0 : i32
    %c0_i32_1 = arith.constant 0 : i32
    %c0_i32_2 = arith.constant 0 : i32
    return %c0_i32, %c0_i32_0, %c0_i32_1 : i32, i32, i32
  }
  func.func @transform_9(%arg0: i32, %arg1: i32) -> (i32, i32, i32) {
    %c0_i32 = arith.constant 0 : i32
    %c0_i32_0 = arith.constant 0 : i32
    %c0_i32_1 = arith.constant 0 : i32
    %c0_i32_2 = arith.constant 0 : i32
    return %c0_i32, %c0_i32_0, %c0_i32_1 : i32, i32, i32
  }
  func.func @transform_10(%arg0: i32, %arg1: i32) -> (i32, i32, i32) {
    %c0_i32 = arith.constant 0 : i32
    %c0_i32_0 = arith.constant 0 : i32
    return %arg1, %arg0, %c0_i32 : i32, i32, i32
  }
}

</mosaic_0001>

<llo_original>
// kernel: tpu_custom_call.1
$region0: #{tpu_custom_call.1}
  #allocation0 [shape = 'u32[]', space=smem, size = 0x4, offset = 0x4, fixed_abs, tag = 'smem constant byte address 0x4 - core index']
  #allocation1 [shape = 'u32[144,128]{1,0:T(1,128)}', space=vmem, size = 0x12000, scoped, tag = 'internal scratch']
  #allocation2 [shape = 'f32[8,128]{1,0:T(8,128)}', space=vmem, size = 0x1000, scoped, tag = 'scratch operand']
  #allocation3 [shape = 'f32[8,1]{1,0:T(8,128)}', space=vmem, size = 0x1000, scoped, tag = 'scratch operand']
  %s0 = inlined_call_operand.hbm [shape: f32[8,128], index: 0, kind: input, shape index: {}]
  %s1 = inlined_call_operand.hbm [shape: f32[128,256], index: 1, kind: input, shape index: {}]
  %s2 = inlined_call_operand.hbm [shape: f32[256,128], index: 2, kind: input, shape index: {}]
  %s3 = inlined_call_operand.hbm [shape: f32[128,128], index: 3, kind: input, shape index: {}]
  %s4 = inlined_call_operand.hbm [shape: f32[128,128], index: 4, kind: input, shape index: {}]
  %s5 = inlined_call_operand.vmem [shape: f32[1,128], index: 5, kind: input, shape index: {}]
  %s6 = inlined_call_operand.hbm [shape: f32[8,256], index: 6, kind: input, shape index: {}]
  %s7 = inlined_call_operand.hbm [shape: f32[12,128,128], index: 7, kind: input, shape index: {}]
  %s8 = inlined_call_operand.hbm [shape: f32[12,128,128], index: 8, kind: input, shape index: {}]
  %s9 = inlined_call_operand.hbm [shape: f32[12,2,128], index: 9, kind: input, shape index: {}]
  %s10 = inlined_call_operand.hbm [shape: f32[1,8,128], index: 10, kind: output, shape index: {}]
  %s11 = sld [smem:[#allocation0]]
  $region90: #{tpu_custom_call.1} parent=0
    _
  %s13 = ssub.s32 1, %s11
  %s14 = scalar_select 0, %s13, %s11
  $region1: #{tpu_custom_call.1} parent=0
    #allocation4 [shape = 'u8[4096]{0}', space=vmem, size = 0x1000, scoped, tag = 'input window, operand 0, single buffered']
    #allocation5 [shape = 's32[1]{0}', space=sflag, size = 0x4, scoped, tag = 'scoped memory for tpu_custom_call.1']
    #allocation6 [shape = 's32[1]{0}', space=sflag, size = 0x4, scoped, tag = 'scoped memory for tpu_custom_call.1']
    #allocation7 [shape = 'u8[131072]{0}', space=vmem, size = 0x20000, scoped, tag = 'input window, operand 1, single buffered']
    #allocation8 [shape = 's32[1]{0}', space=sflag, size = 0x4, scoped, tag = 'scoped memory for tpu_custom_call.1']
    #allocation9 [shape = 'u8[131072]{0}', space=vmem, size = 0x20000, scoped, tag = 'input window, operand 2, single buffered']
    #allocation10 [shape = 'u8[65536]{0}', space=vmem, size = 0x10000, scoped, tag = 'input window, operand 3, single buffered']
    #allocation11 [shape = 's32[1]{0}', space=sflag, size = 0x4, scoped, tag = 'scoped memory for tpu_custom_call.1']
    #allocation12 [shape = 'u8[65536]{0}', space=vmem, size = 0x10000, scoped, tag = 'input window, operand 4, single buffered']
    #allocation13 [shape = 'u8[8192]{0}', space=vmem, size = 0x2000, scoped, tag = 'input window, operand 6, single buffered']
    #allocation14 [shape = 's32[1]{0}', space=sflag, size = 0x4, scoped, tag = 'scoped memory for tpu_custom_call.1']
    #allocation15 [shape = 'u8[65536]{0}', space=vmem, size = 0x10000, scoped, tag = 'input window, operand 7, single buffered']
    #allocation16 [shape = 'u8[65536]{0}', space=vmem, size = 0x10000, scoped, tag = 'input window, operand 8, single buffered']
    #allocation17 [shape = 's32[1]{0}', space=sflag, size = 0x4, scoped, tag = 'scoped memory for tpu_custom_call.1']
    #allocation18 [shape = 'u8[1024]{0}', space=vmem, size = 0x400, scoped, tag = 'input window, operand 9, single buffered']
    #allocation19 [shape = 'u8[4096]{0}', space=vmem, size = 0x1000, scoped, tag = 'output window, operand 0, single buffered']
    %15 = vsyncpa [#allocation5], 0
    %16 = vsyncpa [#allocation8], 0
    %17 = vsyncpa [#allocation11], 0
    %18 = vsyncpa [#allocation14], 0
    %19 = vsyncpa [#allocation17], 0
    %20 = vsyncpa [#allocation6], 0
    // Predicated region
    $region2: #{tpu_custom_call.1} parent=1 // pred_check
      _
    $region3: #{tpu_custom_call.1} parent=1 // pred_check_branch
      %22 = sbr.rel (0) target = $region5
    $region4: #{tpu_custom_call.1} parent=1 // pred_region
      %s24 = ssub.s32 128, 128
      %25 = vsyncadd [#allocation5], %s24
      %s27 = sshll.u32 [#allocation4], 4
      %s28 = int_to_ptr.vmem [resolvable:$true] %s27
      %30 = dma.hbm_to_vmem [thread:$0]  %s0, 128, %s28, [#allocation5]
    $region5: #{tpu_custom_call.1} parent=1 // pred_fallthru
      _
    // Predicated region
    $region6: #{tpu_custom_call.1} parent=1 // pred_check
      _
    $region7: #{tpu_custom_call.1} parent=1 // pred_check_branch
      %32 = sbr.rel (0) target = $region9
    $region8: #{tpu_custom_call.1} parent=1 // pred_region
      %s34 = ssub.s32 4096, 4096
      %35 = vsyncadd [#allocation8], %s34
      %s36 = sshll.u32 [#allocation7], 4
      %s37 = int_to_ptr.vmem [resolvable:$true] %s36
      %42 = dma.hbm_to_vmem [thread:$0]  %s1, 4096, %s37, [#allocation8], 256, 256, 16
    $region9: #{tpu_custom_call.1} parent=1 // pred_fallthru
      _
    // Predicated region
    $region10: #{tpu_custom_call.1} parent=1 // pred_check
      _
    $region11: #{tpu_custom_call.1} parent=1 // pred_check_branch
      %44 = sbr.rel (0) target = $region13
    $region12: #{tpu_custom_call.1} parent=1 // pred_region
      %s46 = ssub.s32 4096, 4096
      %47 = vsyncadd [#allocation8], %s46
      %s48 = sshll.u32 [#allocation9], 4
      %s49 = int_to_ptr.vmem [resolvable:$true] %s48
      %54 = dma.hbm_to_vmem [thread:$0]  %s2, 4096, %s49, [#allocation8], 128, 128, 8
    $region13: #{tpu_custom_call.1} parent=1 // pred_fallthru
      _
    // Predicated region
    $region14: #{tpu_custom_call.1} parent=1 // pred_check
      _
    $region15: #{tpu_custom_call.1} parent=1 // pred_check_branch
      %56 = sbr.rel (0) target = $region17
    $region16: #{tpu_custom_call.1} parent=1 // pred_region
      %s58 = ssub.s32 2048, 2048
      %59 = vsyncadd [#allocation11], %s58
      %s60 = sshll.u32 [#allocation10], 4
      %s61 = int_to_ptr.vmem [resolvable:$true] %s60
      %66 = dma.hbm_to_vmem [thread:$0]  %s3, 2048, %s61, [#allocation11], 128, 128, 8
    $region17: #{tpu_custom_call.1} parent=1 // pred_fallthru
      _
    // Predicated region
    $region18: #{tpu_custom_call.1} parent=1 // pred_check
      _
    $region19: #{tpu_custom_call.1} parent=1 // pred_check_branch
      %68 = sbr.rel (0) target = $region21
    $region20: #{tpu_custom_call.1} parent=1 // pred_region
      %s70 = ssub.s32 2048, 2048
      %71 = vsyncadd [#allocation11], %s70
      %s72 = sshll.u32 [#allocation12], 4
      %s73 = int_to_ptr.vmem [resolvable:$true] %s72
      %78 = dma.hbm_to_vmem [thread:$0]  %s4, 2048, %s73, [#allocation11], 128, 128, 8
    $region21: #{tpu_custom_call.1} parent=1 // pred_fallthru
      _
    // Predicated region
    $region22: #{tpu_custom_call.1} parent=1 // pred_check
      _
    $region23: #{tpu_custom_call.1} parent=1 // pred_check_branch
      %80 = sbr.rel (0) target = $region25
    $region24: #{tpu_custom_call.1} parent=1 // pred_region
      _
    $region25: #{tpu_custom_call.1} parent=1 // pred_fallthru
      _
    // Predicated region
    $region26: #{tpu_custom_call.1} parent=1 // pred_check
      _
    $region27: #{tpu_custom_call.1} parent=1 // pred_check_branch
      %82 = sbr.rel (0) target = $region29
    $region28: #{tpu_custom_call.1} parent=1 // pred_region
      %s84 = ssub.s32 256, 256
      %85 = vsyncadd [#allocation14], %s84
      %s87 = sshll.u32 [#allocation13], 4
      %s88 = int_to_ptr.vmem [resolvable:$true] %s87
      %90 = dma.hbm_to_vmem [thread:$0]  %s6, 256, %s88, [#allocation14]
    $region29: #{tpu_custom_call.1} parent=1 // pred_fallthru
      _
    // Predicated region
    $region30: #{tpu_custom_call.1} parent=1 // pred_check
      _
    $region31: #{tpu_custom_call.1} parent=1 // pred_check_branch
      %92 = sbr.rel (0) target = $region33
    $region32: #{tpu_custom_call.1} parent=1 // pred_region
      %s94 = ssub.s32 2048, 2048
      %95 = vsyncadd [#allocation14], %s94
      %s96 = sshll.u32 [#allocation15], 4
      %s97 = int_to_ptr.vmem [resolvable:$true] %s96
      %102 = dma.hbm_to_vmem [thread:$0]  %s7, 2048, %s97, [#allocation14], 128, 128, 8
    $region33: #{tpu_custom_call.1} parent=1 // pred_fallthru
      _
    // Predicated region
    $region34: #{tpu_custom_call.1} parent=1 // pred_check
      _
    $region35: #{tpu_custom_call.1} parent=1 // pred_check_branch
      %104 = sbr.rel (0) target = $region37
    $region36: #{tpu_custom_call.1} parent=1 // pred_region
      %s106 = ssub.s32 2048, 2048
      %107 = vsyncadd [#allocation17], %s106
      %s108 = sshll.u32 [#allocation16], 4
      %s109 = int_to_ptr.vmem [resolvable:$true] %s108
      %114 = dma.hbm_to_vmem [thread:$0]  %s8, 2048, %s109, [#allocation17], 128, 128, 8
    $region37: #{tpu_custom_call.1} parent=1 // pred_fallthru
      _
    // Predicated region
    $region38: #{tpu_custom_call.1} parent=1 // pred_check
      _
    $region39: #{tpu_custom_call.1} parent=1 // pred_check_branch
      %116 = sbr.rel (0) target = $region41
    $region40: #{tpu_custom_call.1} parent=1 // pred_region
      %s118 = ssub.s32 32, 32
      %119 = vsyncadd [#allocation17], %s118
      %s121 = sshll.u32 [#allocation18], 4
      %s122 = int_to_ptr.vmem [resolvable:$true] %s121
      %124 = dma.hbm_to_vmem [thread:$0]  %s9, 32, %s122, [#allocation17]
    $region41: #{tpu_custom_call.1} parent=1 // pred_fallthru
      _
    // Predicated region
    $region42: #{tpu_custom_call.1} parent=1 // pred_check
      _
    $region43: #{tpu_custom_call.1} parent=1 // pred_check_branch
      %126 = sbr.rel (0) target = $region45
    $region44: #{tpu_custom_call.1} parent=1 // pred_region
      %127 = dma.done [#allocation5], 128
    $region45: #{tpu_custom_call.1} parent=1 // pred_fallthru
      _
    // Predicated region
    $region46: #{tpu_custom_call.1} parent=1 // pred_check
      _
    $region47: #{tpu_custom_call.1} parent=1 // pred_check_branch
      %129 = sbr.rel (0) target = $region49
    $region48: #{tpu_custom_call.1} parent=1 // pred_region
      %130 = dma.done [#allocation8], 4096
    $region49: #{tpu_custom_call.1} parent=1 // pred_fallthru
      _
    // Predicated region
    $region50: #{tpu_custom_call.1} parent=1 // pred_check
      _
    $region51: #{tpu_custom_call.1} parent=1 // pred_check_branch
      %132 = sbr.rel (0) target = $region53
    $region52: #{tpu_custom_call.1} parent=1 // pred_region
      %133 = dma.done [#allocation8], 4096
    $region53: #{tpu_custom_call.1} parent=1 // pred_fallthru
      _
    // Predicated region
    $region54: #{tpu_custom_call.1} parent=1 // pred_check
      _
    $region55: #{tpu_custom_call.1} parent=1 // pred_check_branch
      %135 = sbr.rel (0) target = $region57
    $region56: #{tpu_custom_call.1} parent=1 // pred_region
      %136 = dma.done [#allocation11], 2048
    $region57: #{tpu_custom_call.1} parent=1 // pred_fallthru
      _
    // Predicated region
    $region58: #{tpu_custom_call.1} parent=1 // pred_check
      _
    $region59: #{tpu_custom_call.1} parent=1 // pred_check_branch
      %138 = sbr.rel (0) target = $region61
    $region60: #{tpu_custom_call.1} parent=1 // pred_region
      %139 = dma.done [#allocation11], 2048
    $region61: #{tpu_custom_call.1} parent=1 // pred_fallthru
      _
    // Predicated region
    $region62: #{tpu_custom_call.1} parent=1 // pred_check
      _
    $region63: #{tpu_custom_call.1} parent=1 // pred_check_branch
      %141 = sbr.rel (0) target = $region65
    $region64: #{tpu_custom_call.1} parent=1 // pred_region
      %142 = dma.done [#allocation14], 256
    $region65: #{tpu_custom_call.1} parent=1 // pred_fallthru
      _
    // Predicated region
    $region66: #{tpu_custom_call.1} parent=1 // pred_check
      _
    $region67: #{tpu_custom_call.1} parent=1 // pred_check_branch
      %144 = sbr.rel (0) target = $region69
    $region68: #{tpu_custom_call.1} parent=1 // pred_region
      %145 = dma.done [#allocation14], 2048
    $region69: #{tpu_custom_call.1} parent=1 // pred_fallthru
      _
    // Predicated region
    $region70: #{tpu_custom_call.1} parent=1 // pred_check
      _
    $region71: #{tpu_custom_call.1} parent=1 // pred_check_branch
      %147 = sbr.rel (0) target = $region73
    $region72: #{tpu_custom_call.1} parent=1 // pred_region
      %148 = dma.done [#allocation17], 2048
    $region73: #{tpu_custom_call.1} parent=1 // pred_fallthru
      _
    // Predicated region
    $region74: #{tpu_custom_call.1} parent=1 // pred_check
      _
    $region75: #{tpu_custom_call.1} parent=1 // pred_check_branch
      %150 = sbr.rel (0) target = $region77
    $region76: #{tpu_custom_call.1} parent=1 // pred_region
      %151 = dma.done [#allocation17], 32
    $region77: #{tpu_custom_call.1} parent=1 // pred_fallthru
      _
    %p152 = scmp.eq.s32.totalorder 0, 0
    // Predicated region
    $region78: #{tpu_custom_call.1} parent=1 // pred_check
      %p153 = pneg %p152
    $region79: #{tpu_custom_call.1} parent=1 // pred_check_branch
      %155 = sbr.rel (%p153) target = $region81
    $region80: #{tpu_custom_call.1} parent=1 // pred_region
      %v156 = vld [vmem:[#allocation13] sm:$0xff]
      %v157 = vld [vmem:[#allocation13 + $0x8] sm:$0xff]
      %v158 = vld [vmem:[#allocation4] sm:$0xff]
      %v159 = vld [vmem:[#allocation7] sm:$0xff]
      %v160 = vld [vmem:[#allocation7 + $0x8] sm:$0xff]
      %v161 = vld [vmem:[#allocation7 + $0x10] sm:$0xff]
      %v162 = vld [vmem:[#allocation7 + $0x18] sm:$0xff]
      %v163 = vld [vmem:[#allocation7 + $0x20] sm:$0xff]
      %v164 = vld [vmem:[#allocation7 + $0x28] sm:$0xff]
      %v165 = vld [vmem:[#allocation7 + $0x30] sm:$0xff]
      %v166 = vld [vmem:[#allocation7 + $0x38] sm:$0xff]
      %v167 = vld [vmem:[#allocation7 + $0x40] sm:$0xff]
      %v168 = vld [vmem:[#allocation7 + $0x48] sm:$0xff]
      %v169 = vld [vmem:[#allocation7 + $0x50] sm:$0xff]
      %v170 = vld [vmem:[#allocation7 + $0x58] sm:$0xff]
      %v171 = vld [vmem:[#allocation7 + $0x60] sm:$0xff]
      %v172 = vld [vmem:[#allocation7 + $0x68] sm:$0xff]
      %v173 = vld [vmem:[#allocation7 + $0x70] sm:$0xff]
      %v174 = vld [vmem:[#allocation7 + $0x78] sm:$0xff]
      %v175 = vld [vmem:[#allocation7 + $0x80] sm:$0xff]
      %v176 = vld [vmem:[#allocation7 + $0x88] sm:$0xff]
      %v177 = vld [vmem:[#allocation7 + $0x90] sm:$0xff]
      %v178 = vld [vmem:[#allocation7 + $0x98] sm:$0xff]
      %v179 = vld [vmem:[#allocation7 + $0xa0] sm:$0xff]
      %v180 = vld [vmem:[#allocation7 + $0xa8] sm:$0xff]
      %v181 = vld [vmem:[#allocation7 + $0xb0] sm:$0xff]
      %v182 = vld [vmem:[#allocation7 + $0xb8] sm:$0xff]
      %v183 = vld [vmem:[#allocation7 + $0xc0] sm:$0xff]
      %v184 = vld [vmem:[#allocation7 + $0xc8] sm:$0xff]
      %v185 = vld [vmem:[#allocation7 + $0xd0] sm:$0xff]
      %v186 = vld [vmem:[#allocation7 + $0xd8] sm:$0xff]
      %v187 = vld [vmem:[#allocation7 + $0xe0] sm:$0xff]
      %v188 = vld [vmem:[#allocation7 + $0xe8] sm:$0xff]
      %v189 = vld [vmem:[#allocation7 + $0xf0] sm:$0xff]
      %v190 = vld [vmem:[#allocation7 + $0xf8] sm:$0xff]
      %v191 = vlaneseq
      %v192 = vshrl.u32 %v191, 7
      %v193 = vsub.s32 0, %v192
      %v194 = vrot.slane %v156, %v193
      %v195 = vlaneseq
      %v196 = vshrl.u32 %v195, 7
      %v197 = vsub.s32 0, %v196
      %v198 = vrot.slane %v157, %v197
      %199 = vmatprep.subr.mxu0 %v190
      %200 = vmatpush1.msra.mxu0 %v189
      %201 = vmatprep.subr.mxu0 %v188
      %202 = vmatpush1.msra.mxu0 %v187
      %203 = vmatprep.subr.mxu0 %v186
      %204 = vmatpush1.msra.mxu0 %v185
      %205 = vmatprep.subr.mxu0 %v184
      %206 = vmatpush1.msra.mxu0 %v183
      %207 = vmatprep.subr.mxu0 %v182
      %208 = vmatpush1.msra.mxu0 %v181
      %209 = vmatprep.subr.mxu0 %v180
      %210 = vmatpush1.msra.mxu0 %v179
      %211 = vmatprep.subr.mxu0 %v178
      %212 = vmatpush1.msra.mxu0 %v177
      %213 = vmatprep.subr.mxu0 %v176
      %214 = vmatpush1.msra.mxu0 %v175
      %215 = vmatprep.subr.mxu0 %v174
      %216 = vmatpush1.msra.mxu0 %v173
      %217 = vmatprep.subr.mxu0 %v172
      %218 = vmatpush1.msra.mxu0 %v171
      %219 = vmatprep.subr.mxu0 %v170
      %220 = vmatpush1.msra.mxu0 %v169
      %221 = vmatprep.subr.mxu0 %v168
      %222 = vmatpush1.msra.mxu0 %v167
      %223 = vmatprep.subr.mxu0 %v166
      %224 = vmatpush1.msra.mxu0 %v165
      %225 = vmatprep.subr.mxu0 %v164
      %226 = vmatpush1.msra.mxu0 %v163
      %227 = vmatprep.subr.mxu0 %v162
      %228 = vmatpush1.msra.mxu0 %v161
      %229 = vmatprep.subr.mxu0 %v160
      %230 = vmatpush1.msra.mxu0 %v159
      %231 = vmatprep.subr.mxu0 0.0
      %232 = vmatpush2.msra.mxu0 0.0
      %233 = vmatprep.subr.mxu0 0.0
      %234 = vmatpush2.msra.mxu0 0.0
      %235 = vmatprep.subr.mxu0 0.0
      %236 = vmatpush2.msra.mxu0 0.0
      %237 = vmatprep.subr.mxu0 0.0
      %238 = vmatpush2.msra.mxu0 0.0
      %239 = vmatprep.subr.mxu0 0.0
      %240 = vmatpush2.msra.mxu0 0.0
      %241 = vmatprep.subr.mxu0 0.0
      %242 = vmatpush2.msra.mxu0 0.0
      %243 = vmatprep.subr.mxu0 0.0
      %244 = vmatpush2.msra.mxu0 0.0
      %245 = vmatprep.subr.mxu0 0.0
      %246 = vmatpush2.msra.mxu0 0.0
      %247 = vmatprep.subr.mxu0 0.0
      %248 = vmatpush2.msra.mxu0 0.0
      %249 = vmatprep.subr.mxu0 0.0
      %250 = vmatpush2.msra.mxu0 0.0
      %251 = vmatprep.subr.mxu0 0.0
      %252 = vmatpush2.msra.mxu0 0.0
      %253 = vmatprep.subr.mxu0 0.0
      %254 = vmatpush2.msra.mxu0 0.0
      %255 = vmatprep.subr.mxu0 0.0
      %256 = vmatpush2.msra.mxu0 0.0
      %257 = vmatprep.subr.mxu0 0.0
      %258 = vmatpush2.msra.mxu0 0.0
      %259 = vmatprep.subr.mxu0 0.0
      %260 = vmatpush2.msra.mxu0 0.0
      %261 = vmatprep.subr.mxu0 0.0
      %262 = vmatpush2.msra.mxu0 0.0
      %263 = vmatprep.mubr.f32.mxu0 0.0
      %264 = vmatmul.mubr.f32.gmra.mxu0 %v158
      %v265 = vpop.f32.mrf.mxu0
      %v266 = vadd.f32 %v194, %v265
      %v267 = vpop.f32.mrf.mxu0
      %v268 = vadd.f32 %v198, %v267
      %269 = vdwg.mxu0
      %v270 = vmax.f32 %v266, 0.0
      %v271 = vmax.f32 %v268, 0.0
      %v272 = vld [vmem:[#allocation9] sm:$0xff]
      %v273 = vld [vmem:[#allocation9 + $0x8] sm:$0xff]
      %v274 = vld [vmem:[#allocation9 + $0x10] sm:$0xff]
      %v275 = vld [vmem:[#allocation9 + $0x18] sm:$0xff]
      %v276 = vld [vmem:[#allocation9 + $0x20] sm:$0xff]
      %v277 = vld [vmem:[#allocation9 + $0x28] sm:$0xff]
      %v278 = vld [vmem:[#allocation9 + $0x30] sm:$0xff]
      %v279 = vld [vmem:[#allocation9 + $0x38] sm:$0xff]
      %v280 = vld [vmem:[#allocation9 + $0x40] sm:$0xff]
      %v281 = vld [vmem:[#allocation9 + $0x48] sm:$0xff]
      %v282 = vld [vmem:[#allocation9 + $0x50] sm:$0xff]
      %v283 = vld [vmem:[#allocation9 + $0x58] sm:$0xff]
      %v284 = vld [vmem:[#allocation9 + $0x60] sm:$0xff]
      %v285 = vld [vmem:[#allocation9 + $0x68] sm:$0xff]
      %v286 = vld [vmem:[#allocation9 + $0x70] sm:$0xff]
      %v287 = vld [vmem:[#allocation9 + $0x78] sm:$0xff]
      %v288 = vld [vmem:[#allocation9 + $0x80] sm:$0xff]
      %v289 = vld [vmem:[#allocation9 + $0x88] sm:$0xff]
      %v290 = vld [vmem:[#allocation9 + $0x90] sm:$0xff]
      %v291 = vld [vmem:[#allocation9 + $0x98] sm:$0xff]
      %v292 = vld [vmem:[#allocation9 + $0xa0] sm:$0xff]
      %v293 = vld [vmem:[#allocation9 + $0xa8] sm:$0xff]
      %v294 = vld [vmem:[#allocation9 + $0xb0] sm:$0xff]
      %v295 = vld [vmem:[#allocation9 + $0xb8] sm:$0xff]
      %v296 = vld [vmem:[#allocation9 + $0xc0] sm:$0xff]
      %v297 = vld [vmem:[#allocation9 + $0xc8] sm:$0xff]
      %v298 = vld [vmem:[#allocation9 + $0xd0] sm:$0xff]
      %v299 = vld [vmem:[#allocation9 + $0xd8] sm:$0xff]
      %v300 = vld [vmem:[#allocation9 + $0xe0] sm:$0xff]
      %v301 = vld [vmem:[#allocation9 + $0xe8] sm:$0xff]
      %v302 = vld [vmem:[#allocation9 + $0xf0] sm:$0xff]
      %v303 = vld [vmem:[#allocation9 + $0xf8] sm:$0xff]
      %v304 = vlaneseq
      %v305 = vshrl.u32 %v304, 7
      %v306 = vsub.s32 1, %v305
      %v307 = vrot.slane %v156, %v306
      %308 = vmatprep.subr.mxu0 0.0
      %309 = vmatpush1.msra.mxu0 %v287
      %310 = vmatprep.subr.mxu0 0.0
      %311 = vmatpush1.msra.mxu0 %v286
      %312 = vmatprep.subr.mxu0 0.0
      %313 = vmatpush1.msra.mxu0 %v285
      %314 = vmatprep.subr.mxu0 0.0
      %315 = vmatpush1.msra.mxu0 %v284
      %316 = vmatprep.subr.mxu0 0.0
      %317 = vmatpush1.msra.mxu0 %v283
      %318 = vmatprep.subr.mxu0 0.0
      %319 = vmatpush1.msra.mxu0 %v282
      %320 = vmatprep.subr.mxu0 0.0
      %321 = vmatpush1.msra.mxu0 %v281
      %322 = vmatprep.subr.mxu0 0.0
      %323 = vmatpush1.msra.mxu0 %v280
      %324 = vmatprep.subr.mxu0 0.0
      %325 = vmatpush1.msra.mxu0 %v279
      %326 = vmatprep.subr.mxu0 0.0
      %327 = vmatpush1.msra.mxu0 %v278
      %328 = vmatprep.subr.mxu0 0.0
      %329 = vmatpush1.msra.mxu0 %v277
      %330 = vmatprep.subr.mxu0 0.0
      %331 = vmatpush1.msra.mxu0 %v276
      %332 = vmatprep.subr.mxu0 0.0
      %333 = vmatpush1.msra.mxu0 %v275
      %334 = vmatprep.subr.mxu0 0.0
      %335 = vmatpush1.msra.mxu0 %v274
      %336 = vmatprep.subr.mxu0 0.0
      %337 = vmatpush1.msra.mxu0 %v273
      %338 = vmatprep.subr.mxu0 0.0
      %339 = vmatpush1.msra.mxu0 %v272
      %340 = vmatprep.subr.mxu0 0.0
      %341 = vmatpush2.msra.mxu0 %v303
      %342 = vmatprep.subr.mxu0 0.0
      %343 = vmatpush2.msra.mxu0 %v302
      %344 = vmatprep.subr.mxu0 0.0
      %345 = vmatpush2.msra.mxu0 %v301
      %346 = vmatprep.subr.mxu0 0.0
      %347 = vmatpush2.msra.mxu0 %v300
      %348 = vmatprep.subr.mxu0 0.0
      %349 = vmatpush2.msra.mxu0 %v299
      %350 = vmatprep.subr.mxu0 0.0
      %351 = vmatpush2.msra.mxu0 %v298
      %352 = vmatprep.subr.mxu0 0.0
      %353 = vmatpush2.msra.mxu0 %v297
      %354 = vmatprep.subr.mxu0 0.0
      %355 = vmatpush2.msra.mxu0 %v296
      %356 = vmatprep.subr.mxu0 0.0
      %357 = vmatpush2.msra.mxu0 %v295
      %358 = vmatprep.subr.mxu0 0.0
      %359 = vmatpush2.msra.mxu0 %v294
      %360 = vmatprep.subr.mxu0 0.0
      %361 = vmatpush2.msra.mxu0 %v293
      %362 = vmatprep.subr.mxu0 0.0
      %363 = vmatpush2.msra.mxu0 %v292
      %364 = vmatprep.subr.mxu0 0.0
      %365 = vmatpush2.msra.mxu0 %v291
      %366 = vmatprep.subr.mxu0 0.0
      %367 = vmatpush2.msra.mxu0 %v290
      %368 = vmatprep.subr.mxu0 0.0
      %369 = vmatpush2.msra.mxu0 %v289
      %370 = vmatprep.subr.mxu0 0.0
      %371 = vmatpush2.msra.mxu0 %v288
      %372 = vmatprep.mubr.f32.mxu0 %v271
      %373 = vmatmul.mubr.f32.gmra.mxu0 %v270
      %v374 = vpop.f32.mrf.mxu0
      %v375 = vadd.f32 %v307, %v374
      %v376 = vpop.f32.mrf.mxu0
      %377 = vdwg.mxu0
      %v378 = vmax.f32 %v375, 0.0
      %v379 = vld [vmem:[#allocation10] sm:$0xff]
      %v380 = vld [vmem:[#allocation10 + $0x8] sm:$0xff]
      %v381 = vld [vmem:[#allocation10 + $0x10] sm:$0xff]
      %v382 = vld [vmem:[#allocation10 + $0x18] sm:$0xff]
      %v383 = vld [vmem:[#allocation10 + $0x20] sm:$0xff]
      %v384 = vld [vmem:[#allocation10 + $0x28] sm:$0xff]
      %v385 = vld [vmem:[#allocation10 + $0x30] sm:$0xff]
      %v386 = vld [vmem:[#allocation10 + $0x38] sm:$0xff]
      %v387 = vld [vmem:[#allocation10 + $0x40] sm:$0xff]
      %v388 = vld [vmem:[#allocation10 + $0x48] sm:$0xff]
      %v389 = vld [vmem:[#allocation10 + $0x50] sm:$0xff]
      %v390 = vld [vmem:[#allocation10 + $0x58] sm:$0xff]
      %v391 = vld [vmem:[#allocation10 + $0x60] sm:$0xff]
      %v392 = vld [vmem:[#allocation10 + $0x68] sm:$0xff]
      %v393 = vld [vmem:[#allocation10 + $0x70] sm:$0xff]
      %v394 = vld [vmem:[#allocation10 + $0x78] sm:$0xff]
      %v395 = vlaneseq
      %v396 = vshrl.u32 %v395, 7
      %v397 = vsub.s32 2, %v396
      %v398 = vrot.slane %v156, %v397
      %399 = vmatprep.subr.mxu0 0.0
      %400 = vmatpush1.msra.mxu0 %v394
      %401 = vmatprep.subr.mxu0 0.0
      %402 = vmatpush1.msra.mxu0 %v393
      %403 = vmatprep.subr.mxu0 0.0
      %404 = vmatpush1.msra.mxu0 %v392
      %405 = vmatprep.subr.mxu0 0.0
      %406 = vmatpush1.msra.mxu0 %v391
      %407 = vmatprep.subr.mxu0 0.0
      %408 = vmatpush1.msra.mxu0 %v390
      %409 = vmatprep.subr.mxu0 0.0
      %410 = vmatpush1.msra.mxu0 %v389
      %411 = vmatprep.subr.mxu0 0.0
      %412 = vmatpush1.msra.mxu0 %v388
      %413 = vmatprep.subr.mxu0 0.0
      %414 = vmatpush1.msra.mxu0 %v387
      %415 = vmatprep.subr.mxu0 0.0
      %416 = vmatpush1.msra.mxu0 %v386
      %417 = vmatprep.subr.mxu0 0.0
      %418 = vmatpush1.msra.mxu0 %v385
      %419 = vmatprep.subr.mxu0 0.0
      %420 = vmatpush1.msra.mxu0 %v384
      %421 = vmatprep.subr.mxu0 0.0
      %422 = vmatpush1.msra.mxu0 %v383
      %423 = vmatprep.subr.mxu0 0.0
      %424 = vmatpush1.msra.mxu0 %v382
      %425 = vmatprep.subr.mxu0 0.0
      %426 = vmatpush1.msra.mxu0 %v381
      %427 = vmatprep.subr.mxu0 0.0
      %428 = vmatpush1.msra.mxu0 %v380
      %429 = vmatprep.subr.mxu0 0.0
      %430 = vmatpush1.msra.mxu0 %v379
      %431 = vmatprep.subr.mxu0 0.0
      %432 = vmatpush2.msra.mxu0 0.0
      %433 = vmatprep.subr.mxu0 0.0
      %434 = vmatpush2.msra.mxu0 0.0
      %435 = vmatprep.subr.mxu0 0.0
      %436 = vmatpush2.msra.mxu0 0.0
      %437 = vmatprep.subr.mxu0 0.0
      %438 = vmatpush2.msra.mxu0 0.0
      %439 = vmatprep.subr.mxu0 0.0
      %440 = vmatpush2.msra.mxu0 0.0
      %441 = vmatprep.subr.mxu0 0.0
      %442 = vmatpush2.msra.mxu0 0.0
      %443 = vmatprep.subr.mxu0 0.0
      %444 = vmatpush2.msra.mxu0 0.0
      %445 = vmatprep.subr.mxu0 0.0
      %446 = vmatpush2.msra.mxu0 0.0
      %447 = vmatprep.subr.mxu0 0.0
      %448 = vmatpush2.msra.mxu0 0.0
      %449 = vmatprep.subr.mxu0 0.0
      %450 = vmatpush2.msra.mxu0 0.0
      %451 = vmatprep.subr.mxu0 0.0
      %452 = vmatpush2.msra.mxu0 0.0
      %453 = vmatprep.subr.mxu0 0.0
      %454 = vmatpush2.msra.mxu0 0.0
      %455 = vmatprep.subr.mxu0 0.0
      %456 = vmatpush2.msra.mxu0 0.0
      %457 = vmatprep.subr.mxu0 0.0
      %458 = vmatpush2.msra.mxu0 0.0
      %459 = vmatprep.subr.mxu0 0.0
      %460 = vmatpush2.msra.mxu0 0.0
      %461 = vmatprep.subr.mxu0 0.0
      %462 = vmatpush2.msra.mxu0 0.0
      %463 = vmatprep.mubr.f32.mxu0 0.0
      %464 = vmatmul.mubr.f32.gmra.mxu0 %v378
      %v465 = vpop.f32.mrf.mxu0
      %v466 = vadd.f32 %v398, %v465
      %v467 = vpop.f32.mrf.mxu0
      %468 = vdwg.mxu0
      %v469 = vmax.f32 %v466, 0.0
      %470 = vst [vmem:[#allocation2] sm:$0xff] %v469
      %v471 = vld [vmem:[#allocation12] sm:$0xff]
      %v472 = vld [vmem:[#allocation12 + $0x8] sm:$0xff]
      %v473 = vld [vmem:[#allocation12 + $0x10] sm:$0xff]
      %v474 = vld [vmem:[#allocation12 + $0x18] sm:$0xff]
      %v475 = vld [vmem:[#allocation12 + $0x20] sm:$0xff]
      %v476 = vld [vmem:[#allocation12 + $0x28] sm:$0xff]
      %v477 = vld [vmem:[#allocation12 + $0x30] sm:$0xff]
      %v478 = vld [vmem:[#allocation12 + $0x38] sm:$0xff]
      %v479 = vld [vmem:[#allocation12 + $0x40] sm:$0xff]
      %v480 = vld [vmem:[#allocation12 + $0x48] sm:$0xff]
      %v481 = vld [vmem:[#allocation12 + $0x50] sm:$0xff]
      %v482 = vld [vmem:[#allocation12 + $0x58] sm:$0xff]
      %v483 = vld [vmem:[#allocation12 + $0x60] sm:$0xff]
      %v484 = vld [vmem:[#allocation12 + $0x68] sm:$0xff]
      %v485 = vld [vmem:[#allocation12 + $0x70] sm:$0xff]
      %v486 = vld [vmem:[#allocation12 + $0x78] sm:$0xff]
      %v487 = vlaneseq
      %v488 = vshrl.u32 %v487, 7
      %v489 = vsub.s32 3, %v488
      %v490 = vrot.slane %v156, %v489
      %491 = vmatprep.subr.mxu0 0.0
      %492 = vmatpush1.msra.mxu0 %v486
      %493 = vmatprep.subr.mxu0 0.0
      %494 = vmatpush1.msra.mxu0 %v485
      %495 = vmatprep.subr.mxu0 0.0
      %496 = vmatpush1.msra.mxu0 %v484
      %497 = vmatprep.subr.mxu0 0.0
      %498 = vmatpush1.msra.mxu0 %v483
      %499 = vmatprep.subr.mxu0 0.0
      %500 = vmatpush1.msra.mxu0 %v482
      %501 = vmatprep.subr.mxu0 0.0
      %502 = vmatpush1.msra.mxu0 %v481
      %503 = vmatprep.subr.mxu0 0.0
      %504 = vmatpush1.msra.mxu0 %v480
      %505 = vmatprep.subr.mxu0 0.0
      %506 = vmatpush1.msra.mxu0 %v479
      %507 = vmatprep.subr.mxu0 0.0
      %508 = vmatpush1.msra.mxu0 %v478
      %509 = vmatprep.subr.mxu0 0.0
      %510 = vmatpush1.msra.mxu0 %v477
      %511 = vmatprep.subr.mxu0 0.0
      %512 = vmatpush1.msra.mxu0 %v476
      %513 = vmatprep.subr.mxu0 0.0
      %514 = vmatpush1.msra.mxu0 %v475
      %515 = vmatprep.subr.mxu0 0.0
      %516 = vmatpush1.msra.mxu0 %v474
      %517 = vmatprep.subr.mxu0 0.0
      %518 = vmatpush1.msra.mxu0 %v473
      %519 = vmatprep.subr.mxu0 0.0
      %520 = vmatpush1.msra.mxu0 %v472
      %521 = vmatprep.subr.mxu0 0.0
      %522 = vmatpush1.msra.mxu0 %v471
      %523 = vmatprep.subr.mxu0 0.0
      %524 = vmatpush2.msra.mxu0 0.0
      %525 = vmatprep.subr.mxu0 0.0
      %526 = vmatpush2.msra.mxu0 0.0
      %527 = vmatprep.subr.mxu0 0.0
      %528 = vmatpush2.msra.mxu0 0.0
      %529 = vmatprep.subr.mxu0 0.0
      %530 = vmatpush2.msra.mxu0 0.0
      %531 = vmatprep.subr.mxu0 0.0
      %532 = vmatpush2.msra.mxu0 0.0
      %533 = vmatprep.subr.mxu0 0.0
      %534 = vmatpush2.msra.mxu0 0.0
      %535 = vmatprep.subr.mxu0 0.0
      %536 = vmatpush2.msra.mxu0 0.0
      %537 = vmatprep.subr.mxu0 0.0
      %538 = vmatpush2.msra.mxu0 0.0
      %539 = vmatprep.subr.mxu0 0.0
      %540 = vmatpush2.msra.mxu0 0.0
      %541 = vmatprep.subr.mxu0 0.0
      %542 = vmatpush2.msra.mxu0 0.0
      %543 = vmatprep.subr.mxu0 0.0
      %544 = vmatpush2.msra.mxu0 0.0
      %545 = vmatprep.subr.mxu0 0.0
      %546 = vmatpush2.msra.mxu0 0.0
      %547 = vmatprep.subr.mxu0 0.0
      %548 = vmatpush2.msra.mxu0 0.0
      %549 = vmatprep.subr.mxu0 0.0
      %550 = vmatpush2.msra.mxu0 0.0
      %551 = vmatprep.subr.mxu0 0.0
      %552 = vmatpush2.msra.mxu0 0.0
      %553 = vmatprep.subr.mxu0 0.0
      %554 = vmatpush2.msra.mxu0 0.0
      %555 = vmatprep.mubr.f32.mxu0 0.0
      %556 = vmatmul.mubr.f32.gmra.mxu0 %v469
      %v557 = vpop.f32.mrf.mxu0
      %v558 = vadd.f32 %v490, %v557
      %v559 = vpop.f32.mrf.mxu0
      %560 = vdwg.mxu0
      %v561 = vmax.f32 %v558, 0.0
      %v562 = vld [vmem:[%s5] sm:$0x1]
      %v564 = vlaneseq
      %v565 = vshrl.u32 %v564, 7
      %v566 = vsub.s32 0, %v565
      %v567 = vrot.slane %v562, %v566
      %v569 = vmul.f32 %v561, %v567
      %v570 = vlaneseq
      %v571 = vshrl.u32 %v570, 7
      %v572 = vsub.s32 4, %v571
      %v573 = vrot.slane %v156, %v572
      %v574 = vadd.f32 %v569, %v573
      %575 = vadd.xlane.f32.xlu0 %v574
      %v576 = vpop.xlane.xlu0 %575
      %vm577 = vcmask 7168
      %578 = vst.msk [vmem:[#allocation3] sm:$0xff] %vm577, %v576
    $region81: #{tpu_custom_call.1} parent=1 // pred_fallthru
      _
    %v579 = vld [vmem:[#allocation2] sm:$0xff]
    %v580 = vld [vmem:[#allocation18] sm:$0x3]
    %v581 = vld [vmem:[#allocation15] sm:$0xff]
    %v582 = vld [vmem:[#allocation15 + $0x8] sm:$0xff]
    %v583 = vld [vmem:[#allocation15 + $0x10] sm:$0xff]
    %v584 = vld [vmem:[#allocation15 + $0x18] sm:$0xff]
    %v585 = vld [vmem:[#allocation15 + $0x20] sm:$0xff]
    %v586 = vld [vmem:[#allocation15 + $0x28] sm:$0xff]
    %v587 = vld [vmem:[#allocation15 + $0x30] sm:$0xff]
    %v588 = vld [vmem:[#allocation15 + $0x38] sm:$0xff]
    %v589 = vld [vmem:[#allocation15 + $0x40] sm:$0xff]
    %v590 = vld [vmem:[#allocation15 + $0x48] sm:$0xff]
    %v591 = vld [vmem:[#allocation15 + $0x50] sm:$0xff]
    %v592 = vld [vmem:[#allocation15 + $0x58] sm:$0xff]
    %v593 = vld [vmem:[#allocation15 + $0x60] sm:$0xff]
    %v594 = vld [vmem:[#allocation15 + $0x68] sm:$0xff]
    %v595 = vld [vmem:[#allocation15 + $0x70] sm:$0xff]
    %v596 = vld [vmem:[#allocation15 + $0x78] sm:$0xff]
    %v597 = vlaneseq
    %v598 = vshrl.u32 %v597, 7
    %v599 = vsub.s32 0, %v598
    %v600 = vrot.slane %v580, %v599
    %601 = vmatprep.subr.mxu0 0.0
    %602 = vmatpush1.msra.mxu0 %v596
    %603 = vmatprep.subr.mxu0 0.0
    %604 = vmatpush1.msra.mxu0 %v595
    %605 = vmatprep.subr.mxu0 0.0
    %606 = vmatpush1.msra.mxu0 %v594
    %607 = vmatprep.subr.mxu0 0.0
    %608 = vmatpush1.msra.mxu0 %v593
    %609 = vmatprep.subr.mxu0 0.0
    %610 = vmatpush1.msra.mxu0 %v592
    %611 = vmatprep.subr.mxu0 0.0
    %612 = vmatpush1.msra.mxu0 %v591
    %613 = vmatprep.subr.mxu0 0.0
    %614 = vmatpush1.msra.mxu0 %v590
    %615 = vmatprep.subr.mxu0 0.0
    %616 = vmatpush1.msra.mxu0 %v589
    %617 = vmatprep.subr.mxu0 0.0
    %618 = vmatpush1.msra.mxu0 %v588
    %619 = vmatprep.subr.mxu0 0.0
    %620 = vmatpush1.msra.mxu0 %v587
    %621 = vmatprep.subr.mxu0 0.0
    %622 = vmatpush1.msra.mxu0 %v586
    %623 = vmatprep.subr.mxu0 0.0
    %624 = vmatpush1.msra.mxu0 %v585
    %625 = vmatprep.subr.mxu0 0.0
    %626 = vmatpush1.msra.mxu0 %v584
    %627 = vmatprep.subr.mxu0 0.0
    %628 = vmatpush1.msra.mxu0 %v583
    %629 = vmatprep.subr.mxu0 0.0
    %630 = vmatpush1.msra.mxu0 %v582
    %631 = vmatprep.subr.mxu0 0.0
    %632 = vmatpush1.msra.mxu0 %v581
    %633 = vmatprep.subr.mxu0 0.0
    %634 = vmatpush2.msra.mxu0 0.0
    %635 = vmatprep.subr.mxu0 0.0
    %636 = vmatpush2.msra.mxu0 0.0
    %637 = vmatprep.subr.mxu0 0.0
    %638 = vmatpush2.msra.mxu0 0.0
    %639 = vmatprep.subr.mxu0 0.0
    %640 = vmatpush2.msra.mxu0 0.0
    %641 = vmatprep.subr.mxu0 0.0
    %642 = vmatpush2.msra.mxu0 0.0
    %643 = vmatprep.subr.mxu0 0.0
    %644 = vmatpush2.msra.mxu0 0.0
    %645 = vmatprep.subr.mxu0 0.0
    %646 = vmatpush2.msra.mxu0 0.0
    %647 = vmatprep.subr.mxu0 0.0
    %648 = vmatpush2.msra.mxu0 0.0
    %649 = vmatprep.subr.mxu0 0.0
    %650 = vmatpush2.msra.mxu0 0.0
    %651 = vmatprep.subr.mxu0 0.0
    %652 = vmatpush2.msra.mxu0 0.0
    %653 = vmatprep.subr.mxu0 0.0
    %654 = vmatpush2.msra.mxu0 0.0
    %655 = vmatprep.subr.mxu0 0.0
    %656 = vmatpush2.msra.mxu0 0.0
    %657 = vmatprep.subr.mxu0 0.0
    %658 = vmatpush2.msra.mxu0 0.0
    %659 = vmatprep.subr.mxu0 0.0
    %660 = vmatpush2.msra.mxu0 0.0
    %661 = vmatprep.subr.mxu0 0.0
    %662 = vmatpush2.msra.mxu0 0.0
    %663 = vmatprep.subr.mxu0 0.0
    %664 = vmatpush2.msra.mxu0 0.0
    %665 = vmatprep.mubr.f32.mxu0 0.0
    %666 = vmatmul.mubr.f32.gmra.mxu0 %v579
    %v667 = vpop.f32.mrf.mxu0
    %v668 = vadd.f32 %v600, %v667
    %v669 = vpop.f32.mrf.mxu0
    %670 = vdwg.mxu0
    %v671 = vmax.f32 %v668, 0.0
    %v672 = vld [vmem:[#allocation16] sm:$0xff]
    %v673 = vld [vmem:[#allocation16 + $0x8] sm:$0xff]
    %v674 = vld [vmem:[#allocation16 + $0x10] sm:$0xff]
    %v675 = vld [vmem:[#allocation16 + $0x18] sm:$0xff]
    %v676 = vld [vmem:[#allocation16 + $0x20] sm:$0xff]
    %v677 = vld [vmem:[#allocation16 + $0x28] sm:$0xff]
    %v678 = vld [vmem:[#allocation16 + $0x30] sm:$0xff]
    %v679 = vld [vmem:[#allocation16 + $0x38] sm:$0xff]
    %v680 = vld [vmem:[#allocation16 + $0x40] sm:$0xff]
    %v681 = vld [vmem:[#allocation16 + $0x48] sm:$0xff]
    %v682 = vld [vmem:[#allocation16 + $0x50] sm:$0xff]
    %v683 = vld [vmem:[#allocation16 + $0x58] sm:$0xff]
    %v684 = vld [vmem:[#allocation16 + $0x60] sm:$0xff]
    %v685 = vld [vmem:[#allocation16 + $0x68] sm:$0xff]
    %v686 = vld [vmem:[#allocation16 + $0x70] sm:$0xff]
    %v687 = vld [vmem:[#allocation16 + $0x78] sm:$0xff]
    %v688 = vlaneseq
    %v689 = vshrl.u32 %v688, 7
    %v690 = vsub.s32 1, %v689
    %v691 = vrot.slane %v580, %v690
    %692 = vmatprep.subr.mxu0 0.0
    %693 = vmatpush1.msra.mxu0 %v687
    %694 = vmatprep.subr.mxu0 0.0
    %695 = vmatpush1.msra.mxu0 %v686
    %696 = vmatprep.subr.mxu0 0.0
    %697 = vmatpush1.msra.mxu0 %v685
    %698 = vmatprep.subr.mxu0 0.0
    %699 = vmatpush1.msra.mxu0 %v684
    %700 = vmatprep.subr.mxu0 0.0
    %701 = vmatpush1.msra.mxu0 %v683
    %702 = vmatprep.subr.mxu0 0.0
    %703 = vmatpush1.msra.mxu0 %v682
    %704 = vmatprep.subr.mxu0 0.0
    %705 = vmatpush1.msra.mxu0 %v681
    %706 = vmatprep.subr.mxu0 0.0
    %707 = vmatpush1.msra.mxu0 %v680
    %708 = vmatprep.subr.mxu0 0.0
    %709 = vmatpush1.msra.mxu0 %v679
    %710 = vmatprep.subr.mxu0 0.0
    %711 = vmatpush1.msra.mxu0 %v678
    %712 = vmatprep.subr.mxu0 0.0
    %713 = vmatpush1.msra.mxu0 %v677
    %714 = vmatprep.subr.mxu0 0.0
    %715 = vmatpush1.msra.mxu0 %v676
    %716 = vmatprep.subr.mxu0 0.0
    %717 = vmatpush1.msra.mxu0 %v675
    %718 = vmatprep.subr.mxu0 0.0
    %719 = vmatpush1.msra.mxu0 %v674
    %720 = vmatprep.subr.mxu0 0.0
    %721 = vmatpush1.msra.mxu0 %v673
    %722 = vmatprep.subr.mxu0 0.0
    %723 = vmatpush1.msra.mxu0 %v672
    %724 = vmatprep.subr.mxu0 0.0
    %725 = vmatpush2.msra.mxu0 0.0
    %726 = vmatprep.subr.mxu0 0.0
    %727 = vmatpush2.msra.mxu0 0.0
    %728 = vmatprep.subr.mxu0 0.0
    %729 = vmatpush2.msra.mxu0 0.0
    %730 = vmatprep.subr.mxu0 0.0
    %731 = vmatpush2.msra.mxu0 0.0
    %732 = vmatprep.subr.mxu0 0.0
    %733 = vmatpush2.msra.mxu0 0.0
    %734 = vmatprep.subr.mxu0 0.0
    %735 = vmatpush2.msra.mxu0 0.0
    %736 = vmatprep.subr.mxu0 0.0
    %737 = vmatpush2.msra.mxu0 0.0
    %738 = vmatprep.subr.mxu0 0.0
    %739 = vmatpush2.msra.mxu0 0.0
    %740 = vmatprep.subr.mxu0 0.0
    %741 = vmatpush2.msra.mxu0 0.0
    %742 = vmatprep.subr.mxu0 0.0
    %743 = vmatpush2.msra.mxu0 0.0
    %744 = vmatprep.subr.mxu0 0.0
    %745 = vmatpush2.msra.mxu0 0.0
    %746 = vmatprep.subr.mxu0 0.0
    %747 = vmatpush2.msra.mxu0 0.0
    %748 = vmatprep.subr.mxu0 0.0
    %749 = vmatpush2.msra.mxu0 0.0
    %750 = vmatprep.subr.mxu0 0.0
    %751 = vmatpush2.msra.mxu0 0.0
    %752 = vmatprep.subr.mxu0 0.0
    %753 = vmatpush2.msra.mxu0 0.0
    %754 = vmatprep.subr.mxu0 0.0
    %755 = vmatpush2.msra.mxu0 0.0
    %756 = vmatprep.mubr.f32.mxu0 0.0
    %757 = vmatmul.mubr.f32.gmra.mxu0 %v671
    %v758 = vpop.f32.mrf.mxu0
    %v759 = vadd.f32 %v691, %v758
    %v760 = vpop.f32.mrf.mxu0
    %761 = vdwg.mxu0
    %762 = vmax.xlane.f32.xlu0 %v759
    %v763 = vpop.xlane.xlu0 %762
    %v764 = vsub.f32 %v759, %v763
    %v765 = vmul.f32 %v764, 1.442695
    %v766 = vpow.pop %v765
    %767 = vadd.xlane.f32.xlu0 %v766
    %v768 = vpop.xlane.xlu0 %767
    %v769 = vlog2.pop %v768
    %v770 = vmul.f32 %v769, 0.6931472
    %v771 = vrcp.pop %v768
    %v772 = vmul.f32 %v768, %v771
    %v773 = vsub.f32 2.0, %v772
    %v774 = vmul.f32 %v771, %v773
    %v775 = vmul.f32 %v766, %v764
    %776 = vadd.xlane.f32.xlu0 %v775
    %v777 = vpop.xlane.xlu0 %776
    %v778 = vmul.f32 %v777, %v774
    %v779 = vsub.f32 %v770, %v778
    %v780 = vadd.f32 %v763, %v770
    %v781 = vlaneseq
    %v782 = vand.u32 %v781, 127
    %vm783 = vcmp.eq.s32.totalorder %v782, 125
    %vm784 = vcmp.eq.s32.totalorder %v782, 126
    %vm785 = vcmp.eq.s32.totalorder %v782, 127
    %v786 = vld [vmem:[#allocation3] sm:$0xff]
    %788 = vset.pattern.permute.xlu0 0
    %789 = vperm.xlu0 %788, %v786
    %v790 = vpop.permute.xlu0 %789
    %v792 = vsel %vm785, %v790, %v759
    %v793 = vsel %vm784, %v779, %v792
    %v794 = vsel %vm783, %v780, %v793
    %795 = vst [vmem:[#allocation19] sm:$0xff] %v794
    // Predicated region
    $region82: #{tpu_custom_call.1} parent=1 // pred_check
      _
    $region83: #{tpu_custom_call.1} parent=1 // pred_check_branch
      %797 = sbr.rel (0) target = $region85
    $region84: #{tpu_custom_call.1} parent=1 // pred_region
      %s799 = ssub.s32 128, 128
      %800 = vsyncadd [#allocation6], %s799
      %s802 = sshll.u32 [#allocation19], 4
      %s803 = int_to_ptr.vmem [resolvable:$true] %s802
      %805 = dma.vmem_to_hbm [thread:$0]  %s803, 128, %s10, [#allocation6]
    $region85: #{tpu_custom_call.1} parent=1 // pred_fallthru
      _
    // Predicated region
    $region86: #{tpu_custom_call.1} parent=1 // pred_check
      _
    $region87: #{tpu_custom_call.1} parent=1 // pred_check_branch
      %807 = sbr.rel (0) target = $region89
    $region88: #{tpu_custom_call.1} parent=1 // pred_region
      %808 = dma.done [#allocation6], 128
    $region89: #{tpu_custom_call.1} parent=1 // pred_fallthru
      _
    %809 = vsyncpa [#allocation5], 1
    %810 = vsyncpa [#allocation8], 1
    %811 = vsyncpa [#allocation11], 1
    %812 = vsyncpa [#allocation14], 1
    %813 = vsyncpa [#allocation17], 1
    %814 = vsyncpa [#allocation6], 1

</llo_original>
